<compile_context>
chip_gen: v7x
topology: tpu7x:2x2x1
jax: 0.10.0
libtpu: 0.0.40
codegen_flags: <defaults>
</compile_context>

<pallas_src>
import functools

import jax
import jax.numpy as jnp
from jax import lax
from jax.experimental import pallas as pl
from jax.experimental.pallas import tpu as pltpu


def _round_up(x, m):
    return (x + m - 1) // m * m


def _tpu_layout_hint():
    """Best-effort (generation, tensorcores_per_device)."""
    try:
        kind = jax.devices()[0].device_kind.lower()
    except Exception:
        return 0, 1
    gen = 0
    for g in (7, 6, 5, 4):
        if str(g) in kind:
            gen = g
            break
    two_core = gen >= 7 or ("v4" in kind) or ("v5p" in kind)
    return gen, (2 if two_core else 1)


def _pick_time_chunk(S, cap):
    """Largest divisor of S that is <= cap (C[-1] then lands exactly on the
    final in-chunk step; worst case 1 -- never the whole-sequence fallback)."""
    for t in range(min(S, cap), 0, -1):
        if S % t == 0:
            return t
    return 1


def _pick_hidden_block(Hp, Bp, D, rows, w_bytes, out_bytes, min_blocks):
    """Largest multiple-of-128 divisor of Hp that (a) yields >= min_blocks
    hidden blocks (one per TensorCore), (b) keeps the per-block VMEM
    estimate under budget, and (c) keeps the per-timestep (Bp, hb) f32 slab
    <= 64 KiB (bounded vreg pressure in the scan); constraints relax in
    that order when impossible."""
    budget = 40 * 1024 * 1024

    def est(hb):
        weights = 2 * 3 * D * hb * w_bytes              # resident gate weights (x2 bufs)
        x_blk = 2 * rows * D * w_bytes                  # x chunk (double buffered)
        h_blk = 2 * rows * hb * out_bytes               # H chunk (double buffered)
        gates = 3 * rows * hb * 4                       # Z/F/O VMEM scratch (f32)
        cell = Bp * hb * (4 + 2 * 4 + 2 * out_bytes)    # c scratch + c0 in + c_last out
        return weights + x_blk + h_blk + gates + cell

    cands = [hb for hb in range(Hp, 0, -128) if Hp % hb == 0]
    preds = (
        lambda hb: Hp // hb >= min_blocks and est(hb) <= budget and Bp * hb * 4 <= 64 * 1024,
        lambda hb: Hp // hb >= min_blocks and est(hb) <= budget,
        lambda hb: est(hb) <= budget,
        lambda hb: True,
    )
    for pred in preds:
        sel = [hb for hb in cands if pred(hb)]
        if sel:
            return sel[0]
    return 128


# ----------------------------------------------------------------------------
# Fused kernel: gate projection + activations + ForgetMult scan + output gate
# ----------------------------------------------------------------------------
def _qrnn_fused_kernel(x_ref, wz_ref, wf_ref, wo_ref, bz_ref, bf_ref, bo_ref,
                       c0_ref, h_ref, clast_ref, z_s, f_s, o_s, c_s,
                       *, batch, t_chunk, unroll):
    t_idx = pl.program_id(1)

    @pl.when(t_idx == 0)
    def _():
        c_s[...] = c0_ref[...]          # hidden=None -> zeros (prepared wrapper-side)

    # Chunk-level gate projection: (t_chunk*batch, D) @ (D, hb) per gate on the
    # MXU (f32 accumulation), activations on VPU/EUP, results stay in VMEM.
    x = x_ref[...]
    z_s[...] = jnp.tanh(
        jnp.dot(x, wz_ref[...], preferred_element_type=jnp.float32) + bz_ref[...])
    f_s[...] = jax.nn.sigmoid(
        jnp.dot(x, wf_ref[...], preferred_element_type=jnp.float32) + bf_ref[...])
    o_s[...] = jax.nn.sigmoid(
        jnp.dot(x, wo_ref[...], preferred_element_type=jnp.float32) + bo_ref[...])

    # Sequential ForgetMult over the chunk; cell state carried in vregs and
    # persisted across time chunks via c_s.
    def step(tt, c):
        r = pl.multiple_of(tt * batch, 8)                # batch padded to %8 == 0
        z = z_s[pl.ds(r, batch), :]
        f = f_s[pl.ds(r, batch), :]
        o = o_s[pl.ds(r, batch), :]
        c = c + f * (z - c)                              # f*z + (1-f)*c, 3 VALU ops
        h_ref[pl.ds(r, batch), :] = (o * c).astype(h_ref.dtype)
        return c

    c = lax.fori_loop(0, t_chunk, step, c_s[...], unroll=unroll)
    c_s[...] = c

    @pl.when(t_idx == pl.num_programs(1) - 1)
    def _():
        clast_ref[...] = c.astype(clast_ref.dtype)


# ----------------------------------------------------------------------------
# Wrapper
# ----------------------------------------------------------------------------
def qrnn_layer_forward(X, W, b, hidden_size, *, hidden=None,
                       matmul_dtype=jnp.bfloat16):
    """X: (S, B, D) time-major.  W: (3*H, D) (PyTorch nn.Linear layout).
    b: (3*H,).  hidden: optional (B, H) initial cell.  Returns (H, C_last)
    with shapes (S, B, H) and (1, B, H).

    matmul_dtype is the MXU input dtype for the gate projection (bf16
    recommended; accumulation, activations and the recurrence stay f32)."""
    S, B, D = X.shape
    Hd = int(hidden_size)
    assert W.shape == (3 * Hd, D) and b.shape == (3 * Hd,)
    out_dtype = X.dtype

    # --- pad batch to a sublane multiple and hidden to a lane multiple ------
    Bp = _round_up(B, 8)
    Hp = _round_up(Hd, 128)

    if Bp != B:
        X = jnp.pad(X, ((0, 0), (0, Bp - B), (0, 0)))
    x_flat = X.reshape(S * Bp, D).astype(matmul_dtype)

    def pad2(a, rows, cols):
        pr, pc = rows - a.shape[0], cols - a.shape[1]
        return jnp.pad(a, ((0, pr), (0, pc))) if (pr or pc) else a

    Wt = W.T                                             # (D, 3H)
    wz = pad2(Wt[:, :Hd], D, Hp).astype(matmul_dtype)
    wf = pad2(Wt[:, Hd:2 * Hd], D, Hp).astype(matmul_dtype)
    wo = pad2(Wt[:, 2 * Hd:], D, Hp).astype(matmul_dtype)
    bz = pad2(b[:Hd].reshape(1, Hd).astype(jnp.float32), 1, Hp)
    bf_ = pad2(b[Hd:2 * Hd].reshape(1, Hd).astype(jnp.float32), 1, Hp)
    bo = pad2(b[2 * Hd:].reshape(1, Hd).astype(jnp.float32), 1, Hp)

    if hidden is None:
        c0 = jnp.zeros((Bp, Hp), jnp.float32)
    else:
        h0 = jnp.asarray(hidden, jnp.float32).reshape(B, Hd)
        c0 = jnp.zeros((Bp, Hp), jnp.float32).at[:B, :Hd].set(h0)

    # --- generation-aware tiling --------------------------------------------
    gen, n_cores = _tpu_layout_hint()
    t_chunk = _pick_time_chunk(S, 64 if gen >= 7 else 32)
    rows = t_chunk * Bp
    w_bytes = jnp.dtype(matmul_dtype).itemsize
    o_bytes = jnp.dtype(out_dtype).itemsize
    hb = _pick_hidden_block(Hp, Bp, D, rows, w_bytes, o_bytes, min_blocks=n_cores)
    grid = (Hp // hb, S // t_chunk)      # (hidden blocks [parallel], time [sequential])

    kernel = functools.partial(_qrnn_fused_kernel, batch=Bp, t_chunk=t_chunk,
                               unroll=max(1, min(8, t_chunk)))

    # Weight/bias/cell block indices are constant along the inner time axis,
    # so they are fetched once per hidden block and stay resident in VMEM.
    w_spec = pl.BlockSpec((D, hb), lambda j, t: (0, j))
    b_spec = pl.BlockSpec((1, hb), lambda j, t: (0, j))
    bh_spec = pl.BlockSpec((Bp, hb), lambda j, t: (0, j))

    h_flat, c_last = pl.pallas_call(
        kernel,
        out_shape=(jax.ShapeDtypeStruct((S * Bp, Hp), out_dtype),
                   jax.ShapeDtypeStruct((Bp, Hp), out_dtype)),
        grid_spec=pltpu.PrefetchScalarGridSpec(
            num_scalar_prefetch=0,
            grid=grid,
            in_specs=[
                pl.BlockSpec((rows, D), lambda j, t: (t, 0)),     # x chunk rows
                w_spec, w_spec, w_spec,                           # Wz, Wf, Wo
                b_spec, b_spec, b_spec,                           # bz, bf, bo
                bh_spec,                                          # initial cell
            ],
            out_specs=[
                pl.BlockSpec((rows, hb), lambda j, t: (t, j)),    # H
                bh_spec,                                          # C[-1]
            ],
            scratch_shapes=[
                pltpu.VMEM((rows, hb), jnp.float32),              # Z chunk (VMEM only)
                pltpu.VMEM((rows, hb), jnp.float32),              # F chunk (VMEM only)
                pltpu.VMEM((rows, hb), jnp.float32),              # O chunk (VMEM only)
                pltpu.VMEM((Bp, hb), jnp.float32),                # cell state
            ],
        ),
        compiler_params=pltpu.CompilerParams(
            dimension_semantics=("parallel", "arbitrary"),
            vmem_limit_bytes=64 * 1024 * 1024),
    )(x_flat, wz, wf, wo, bz, bf_, bo, c0)

    H_out = h_flat.reshape(S, Bp, Hp)[:, :B, :Hd]
    C_last = c_last[:B, :Hd].reshape(1, B, Hd)
    return H_out, C_last


# ----------------------------------------------------------------------------
# Pure-JAX reference matching the PyTorch forward
# ----------------------------------------------------------------------------
def qrnn_layer_reference(X, W, b, hidden_size, hidden=None):
    Hd = hidden_size
    Y = jnp.einsum('sbd,kd->sbk', X, W) + b
    Z, F, O = Y[..., :Hd], Y[..., Hd:2 * Hd], Y[..., 2 * Hd:]
    Z = jnp.tanh(Z)
    F = jax.nn.sigmoid(F)
    O = jax.nn.sigmoid(O)

    def step(c_prev, fz):
        f, z = fz
        c = f * z + (1.0 - f) * c_prev
        return c, c

    c0 = (jnp.zeros((X.shape[1], Hd), X.dtype) if hidden is None
          else jnp.asarray(hidden, X.dtype).reshape(X.shape[1], Hd))
    _, C = jax.lax.scan(step, c0, (F, Z))
    Hout = O * C
    return Hout, C[-1:, :, :]


if __name__ == "__main__":
    key = jax.random.PRNGKey(0)

    def make(S, B, D, Hd, k):
        kx, kw, kb = jax.random.split(k, 3)
        X = jax.random.normal(kx, (S, B, D), dtype=jnp.float32)
        bound = 1.0 / float(D) ** 0.5
        W = jax.random.uniform(kw, (3 * Hd, D), jnp.float32, -bound, bound)
        b = jax.random.uniform(kb, (3 * Hd,), jnp.float32, -bound, bound)
        return X, W, b

    k1, k2 = jax.random.split(key)

    # Aligned shapes, f32 MXU path: tight check against the pure-JAX reference.
    S, B, D, Hd = 8, 8, 32, 32
    X, W, b = make(S, B, D, Hd, k1)
    H_out, C_last = qrnn_layer_forward(X, W, b, Hd, matmul_dtype=jnp.float32)
    jax.block_until_ready((H_out, C_last))
    H_ref, C_ref = qrnn_layer_reference(X, W, b, Hd)
    assert H_out.shape == (S, B, Hd) and C_last.shape == (1, B, Hd)
    assert jnp.allclose(H_out, H_ref, atol=1e-4, rtol=1e-4)
    assert jnp.allclose(C_last, C_ref, atol=1e-4, rtol=1e-4)

    # Unaligned shapes (exercise batch/hidden padding), f32 MXU path.
    S2, B2, D2, Hd2 = 6, 5, 24, 48
    X2, W2, b2 = make(S2, B2, D2, Hd2, k2)
    H2, C2 = qrnn_layer_forward(X2, W2, b2, Hd2, matmul_dtype=jnp.float32)
    jax.block_until_ready((H2, C2))
    H2_ref, C2_ref = qrnn_layer_reference(X2, W2, b2, Hd2)
    assert H2.shape == (S2, B2, Hd2) and C2.shape == (1, B2, Hd2)
    assert jnp.allclose(H2, H2_ref, atol=1e-4, rtol=1e-4)
    assert jnp.allclose(C2, C2_ref, atol=1e-4, rtol=1e-4)

    # Default bf16 MXU path (f32 accumulation + f32 recurrence): loose tolerance.
    Hb, Cb = qrnn_layer_forward(X, W, b, Hd)
    jax.block_until_ready((Hb, Cb))
    assert jnp.allclose(Hb, H_ref, atol=5e-2, rtol=5e-2)
    assert jnp.allclose(Cb, C_ref, atol=5e-2, rtol=5e-2)

    print("KERNEL_OK")
</pallas_src>

<mosaic_0001>
module attributes {stable_mosaic.version = 11 : i64} {
  func.func @_qrnn_fused_kernel(%arg0: i32, %arg1: i32, %arg2: memref<64x32xf32, #tpu.memory_space<vmem>>, %arg3: memref<32x128xf32, #tpu.memory_space<vmem>>, %arg4: memref<32x128xf32, #tpu.memory_space<vmem>>, %arg5: memref<32x128xf32, #tpu.memory_space<vmem>>, %arg6: memref<1x128xf32, #tpu.memory_space<vmem>>, %arg7: memref<1x128xf32, #tpu.memory_space<vmem>>, %arg8: memref<1x128xf32, #tpu.memory_space<vmem>>, %arg9: memref<8x128xf32, #tpu.memory_space<vmem>>, %arg10: memref<64x128xf32, #tpu.memory_space<vmem>>, %arg11: memref<8x128xf32, #tpu.memory_space<vmem>>, %arg12: memref<64x128xf32, #tpu.memory_space<vmem>>, %arg13: memref<64x128xf32, #tpu.memory_space<vmem>>, %arg14: memref<64x128xf32, #tpu.memory_space<vmem>>, %arg15: memref<8x128xf32, #tpu.memory_space<vmem>>) attributes {dimension_semantics = [#tpu.dimension_semantics<parallel>, #tpu.dimension_semantics<arbitrary>], iteration_bounds = array<i64: 1, 1>, scalar_prefetch = 0 : i64, scratch_operands = 4 : i64, tpu.core_type = #tpu.core_type<tc>, window_params = [{transform_indices = @transform_0, window_bounds = array<i64: 64, 32>}, {transform_indices = @transform_1, window_bounds = array<i64: 32, 128>}, {transform_indices = @transform_2, window_bounds = array<i64: 32, 128>}, {transform_indices = @transform_3, window_bounds = array<i64: 32, 128>}, {transform_indices = @transform_4, window_bounds = array<i64: 1, 128>}, {transform_indices = @transform_5, window_bounds = array<i64: 1, 128>}, {transform_indices = @transform_6, window_bounds = array<i64: 1, 128>}, {transform_indices = @transform_7, window_bounds = array<i64: 8, 128>}, {transform_indices = @transform_8, window_bounds = array<i64: 64, 128>}, {transform_indices = @transform_9, window_bounds = array<i64: 8, 128>}]} {
    %c0_i32 = arith.constant 0 : i32
    %0 = arith.cmpi eq, %arg1, %c0_i32 : i32
    %1 = arith.extui %0 : i1 to i32
    %c0_i32_0 = arith.constant 0 : i32
    %2 = arith.cmpi ne, %1, %c0_i32_0 : i32
    scf.if %2 {
      %c0_71 = arith.constant 0 : index
      %c0_72 = arith.constant 0 : index
      %150 = vector.load %arg9[%c0_71, %c0_72] : memref<8x128xf32, #tpu.memory_space<vmem>>, vector<8x128xf32>
      %c0_73 = arith.constant 0 : index
      %c0_74 = arith.constant 0 : index
      %151 = vector.load %arg15[%c0_73, %c0_74] : memref<8x128xf32, #tpu.memory_space<vmem>>, vector<8x128xf32>
      tpu.vector_store %arg15[%c0_73, %c0_74], %150 {strides = array<i32>} : memref<8x128xf32, #tpu.memory_space<vmem>>, vector<8x128xf32>,
    } else {
    }
    %c0 = arith.constant 0 : index
    %c0_1 = arith.constant 0 : index
    %3 = vector.load %arg2[%c0, %c0_1] : memref<64x32xf32, #tpu.memory_space<vmem>>, vector<64x32xf32>
    %c0_2 = arith.constant 0 : index
    %c0_3 = arith.constant 0 : index
    %4 = vector.load %arg3[%c0_2, %c0_3] : memref<32x128xf32, #tpu.memory_space<vmem>>, vector<32x128xf32>
    %cst = arith.constant dense<0.000000e+00> : vector<64x128xf32>
    %5 = tpu.matmul %3, %4, %cst {dimension_numbers = #tpu.dot_dimension_numbers<[1], [0], [0], [1], [0, 0, 1, 1], [], []>} : vector<64x32xf32>, vector<32x128xf32>, vector<64x128xf32> -> vector<64x128xf32>
    %c0_4 = arith.constant 0 : index
    %c0_5 = arith.constant 0 : index
    %6 = vector.load %arg6[%c0_4, %c0_5] : memref<1x128xf32, #tpu.memory_space<vmem>>, vector<1x128xf32>
    %7 = vector.broadcast %6 : vector<1x128xf32> to vector<64x128xf32>
    %8 = arith.addf %5, %7 : vector<64x128xf32>
    %9 = math.tanh %8 : vector<64x128xf32>
    %c0_6 = arith.constant 0 : index
    %c0_7 = arith.constant 0 : index
    %10 = vector.load %arg12[%c0_6, %c0_7] : memref<64x128xf32, #tpu.memory_space<vmem>>, vector<64x128xf32>
    tpu.vector_store %arg12[%c0_6, %c0_7], %9 {strides = array<i32>} : memref<64x128xf32, #tpu.memory_space<vmem>>, vector<64x128xf32>,
    %c0_8 = arith.constant 0 : index
    %c0_9 = arith.constant 0 : index
    %11 = vector.load %arg4[%c0_8, %c0_9] : memref<32x128xf32, #tpu.memory_space<vmem>>, vector<32x128xf32>
    %cst_10 = arith.constant dense<0.000000e+00> : vector<64x128xf32>
    %12 = tpu.matmul %3, %11, %cst_10 {dimension_numbers = #tpu.dot_dimension_numbers<[1], [0], [0], [1], [0, 0, 1, 1], [], []>} : vector<64x32xf32>, vector<32x128xf32>, vector<64x128xf32> -> vector<64x128xf32>
    %c0_11 = arith.constant 0 : index
    %c0_12 = arith.constant 0 : index
    %13 = vector.load %arg7[%c0_11, %c0_12] : memref<1x128xf32, #tpu.memory_space<vmem>>, vector<1x128xf32>
    %14 = vector.broadcast %13 : vector<1x128xf32> to vector<64x128xf32>
    %15 = arith.addf %12, %14 : vector<64x128xf32>
    %16 = arith.negf %15 : vector<64x128xf32>
    %17 = math.exp %16 : vector<64x128xf32>
    %cst_13 = arith.constant 1.000000e+00 : f32
    %18 = vector.broadcast %cst_13 : f32 to vector<64x128xf32>
    %19 = arith.addf %18, %17 : vector<64x128xf32>
    %20 = arith.divf %18, %19 : vector<64x128xf32>
    %c0_14 = arith.constant 0 : index
    %c0_15 = arith.constant 0 : index
    %21 = vector.load %arg13[%c0_14, %c0_15] : memref<64x128xf32, #tpu.memory_space<vmem>>, vector<64x128xf32>
    tpu.vector_store %arg13[%c0_14, %c0_15], %20 {strides = array<i32>} : memref<64x128xf32, #tpu.memory_space<vmem>>, vector<64x128xf32>,
    %c0_16 = arith.constant 0 : index
    %c0_17 = arith.constant 0 : index
    %22 = vector.load %arg5[%c0_16, %c0_17] : memref<32x128xf32, #tpu.memory_space<vmem>>, vector<32x128xf32>
    %cst_18 = arith.constant dense<0.000000e+00> : vector<64x128xf32>
    %23 = tpu.matmul %3, %22, %cst_18 {dimension_numbers = #tpu.dot_dimension_numbers<[1], [0], [0], [1], [0, 0, 1, 1], [], []>} : vector<64x32xf32>, vector<32x128xf32>, vector<64x128xf32> -> vector<64x128xf32>
    %c0_19 = arith.constant 0 : index
    %c0_20 = arith.constant 0 : index
    %24 = vector.load %arg8[%c0_19, %c0_20] : memref<1x128xf32, #tpu.memory_space<vmem>>, vector<1x128xf32>
    %25 = vector.broadcast %24 : vector<1x128xf32> to vector<64x128xf32>
    %26 = arith.addf %23, %25 : vector<64x128xf32>
    %27 = arith.negf %26 : vector<64x128xf32>
    %28 = math.exp %27 : vector<64x128xf32>
    %cst_21 = arith.constant 1.000000e+00 : f32
    %29 = vector.broadcast %cst_21 : f32 to vector<64x128xf32>
    %30 = arith.addf %29, %28 : vector<64x128xf32>
    %31 = arith.divf %29, %30 : vector<64x128xf32>
    %c0_22 = arith.constant 0 : index
    %c0_23 = arith.constant 0 : index
    %32 = vector.load %arg14[%c0_22, %c0_23] : memref<64x128xf32, #tpu.memory_space<vmem>>, vector<64x128xf32>
    tpu.vector_store %arg14[%c0_22, %c0_23], %31 {strides = array<i32>} : memref<64x128xf32, #tpu.memory_space<vmem>>, vector<64x128xf32>,
    %c0_24 = arith.constant 0 : index
    %c0_25 = arith.constant 0 : index
    %33 = vector.load %arg15[%c0_24, %c0_25] : memref<8x128xf32, #tpu.memory_space<vmem>>, vector<8x128xf32>
    %c0_i32_26 = arith.constant 0 : i32
    %c8_i32 = arith.constant 8 : i32
    %34 = arith.muli %c0_i32_26, %c8_i32 : i32
    %35 = tpu.assume_multiple %34, 8 : i32
    %36 = arith.index_cast %35 : i32 to index
    %c0_27 = arith.constant 0 : index
    %37 = vector.load %arg12[%36, %c0_27] : memref<64x128xf32, #tpu.memory_space<vmem>>, vector<8x128xf32>
    %38 = arith.index_cast %35 : i32 to index
    %c0_28 = arith.constant 0 : index
    %39 = vector.load %arg13[%38, %c0_28] : memref<64x128xf32, #tpu.memory_space<vmem>>, vector<8x128xf32>
    %40 = arith.index_cast %35 : i32 to index
    %c0_29 = arith.constant 0 : index
    %41 = vector.load %arg14[%40, %c0_29] : memref<64x128xf32, #tpu.memory_space<vmem>>, vector<8x128xf32>
    %42 = arith.subf %37, %33 : vector<8x128xf32>
    %43 = arith.mulf %39, %42 : vector<8x128xf32>
    %44 = arith.addf %33, %43 : vector<8x128xf32>
    %45 = arith.mulf %41, %44 : vector<8x128xf32>
    %46 = arith.index_cast %35 : i32 to index
    %c0_30 = arith.constant 0 : index
    %47 = vector.load %arg10[%46, %c0_30] : memref<64x128xf32, #tpu.memory_space<vmem>>, vector<8x128xf32>
    tpu.vector_store %arg10[%46, %c0_30], %45 {strides = array<i32>} : memref<64x128xf32, #tpu.memory_space<vmem>>, vector<8x128xf32>,
    %c1_i32 = arith.constant 1 : i32
    %c8_i32_31 = arith.constant 8 : i32
    %48 = arith.muli %c1_i32, %c8_i32_31 : i32
    %49 = tpu.assume_multiple %48, 8 : i32
    %50 = arith.index_cast %49 : i32 to index
    %c0_32 = arith.constant 0 : index
    %51 = vector.load %arg12[%50, %c0_32] : memref<64x128xf32, #tpu.memory_space<vmem>>, vector<8x128xf32>
    %52 = arith.index_cast %49 : i32 to index
    %c0_33 = arith.constant 0 : index
    %53 = vector.load %arg13[%52, %c0_33] : memref<64x128xf32, #tpu.memory_space<vmem>>, vector<8x128xf32>
    %54 = arith.index_cast %49 : i32 to index
    %c0_34 = arith.constant 0 : index
    %55 = vector.load %arg14[%54, %c0_34] : memref<64x128xf32, #tpu.memory_space<vmem>>, vector<8x128xf32>
    %56 = arith.subf %51, %44 : vector<8x128xf32>
    %57 = arith.mulf %53, %56 : vector<8x128xf32>
    %58 = arith.addf %44, %57 : vector<8x128xf32>
    %59 = arith.mulf %55, %58 : vector<8x128xf32>
    %60 = arith.index_cast %49 : i32 to index
    %c0_35 = arith.constant 0 : index
    %61 = vector.load %arg10[%60, %c0_35] : memref<64x128xf32, #tpu.memory_space<vmem>>, vector<8x128xf32>
    tpu.vector_store %arg10[%60, %c0_35], %59 {strides = array<i32>} : memref<64x128xf32, #tpu.memory_space<vmem>>, vector<8x128xf32>,
    %c2_i32 = arith.constant 2 : i32
    %c8_i32_36 = arith.constant 8 : i32
    %62 = arith.muli %c2_i32, %c8_i32_36 : i32
    %63 = tpu.assume_multiple %62, 8 : i32
    %64 = arith.index_cast %63 : i32 to index
    %c0_37 = arith.constant 0 : index
    %65 = vector.load %arg12[%64, %c0_37] : memref<64x128xf32, #tpu.memory_space<vmem>>, vector<8x128xf32>
    %66 = arith.index_cast %63 : i32 to index
    %c0_38 = arith.constant 0 : index
    %67 = vector.load %arg13[%66, %c0_38] : memref<64x128xf32, #tpu.memory_space<vmem>>, vector<8x128xf32>
    %68 = arith.index_cast %63 : i32 to index
    %c0_39 = arith.constant 0 : index
    %69 = vector.load %arg14[%68, %c0_39] : memref<64x128xf32, #tpu.memory_space<vmem>>, vector<8x128xf32>
    %70 = arith.subf %65, %58 : vector<8x128xf32>
    %71 = arith.mulf %67, %70 : vector<8x128xf32>
    %72 = arith.addf %58, %71 : vector<8x128xf32>
    %73 = arith.mulf %69, %72 : vector<8x128xf32>
    %74 = arith.index_cast %63 : i32 to index
    %c0_40 = arith.constant 0 : index
    %75 = vector.load %arg10[%74, %c0_40] : memref<64x128xf32, #tpu.memory_space<vmem>>, vector<8x128xf32>
    tpu.vector_store %arg10[%74, %c0_40], %73 {strides = array<i32>} : memref<64x128xf32, #tpu.memory_space<vmem>>, vector<8x128xf32>,
    %c3_i32 = arith.constant 3 : i32
    %c8_i32_41 = arith.constant 8 : i32
    %76 = arith.muli %c3_i32, %c8_i32_41 : i32
    %77 = tpu.assume_multiple %76, 8 : i32
    %78 = arith.index_cast %77 : i32 to index
    %c0_42 = arith.constant 0 : index
    %79 = vector.load %arg12[%78, %c0_42] : memref<64x128xf32, #tpu.memory_space<vmem>>, vector<8x128xf32>
    %80 = arith.index_cast %77 : i32 to index
    %c0_43 = arith.constant 0 : index
    %81 = vector.load %arg13[%80, %c0_43] : memref<64x128xf32, #tpu.memory_space<vmem>>, vector<8x128xf32>
    %82 = arith.index_cast %77 : i32 to index
    %c0_44 = arith.constant 0 : index
    %83 = vector.load %arg14[%82, %c0_44] : memref<64x128xf32, #tpu.memory_space<vmem>>, vector<8x128xf32>
    %84 = arith.subf %79, %72 : vector<8x128xf32>
    %85 = arith.mulf %81, %84 : vector<8x128xf32>
    %86 = arith.addf %72, %85 : vector<8x128xf32>
    %87 = arith.mulf %83, %86 : vector<8x128xf32>
    %88 = arith.index_cast %77 : i32 to index
    %c0_45 = arith.constant 0 : index
    %89 = vector.load %arg10[%88, %c0_45] : memref<64x128xf32, #tpu.memory_space<vmem>>, vector<8x128xf32>
    tpu.vector_store %arg10[%88, %c0_45], %87 {strides = array<i32>} : memref<64x128xf32, #tpu.memory_space<vmem>>, vector<8x128xf32>,
    %c4_i32 = arith.constant 4 : i32
    %c8_i32_46 = arith.constant 8 : i32
    %90 = arith.muli %c4_i32, %c8_i32_46 : i32
    %91 = tpu.assume_multiple %90, 8 : i32
    %92 = arith.index_cast %91 : i32 to index
    %c0_47 = arith.constant 0 : index
    %93 = vector.load %arg12[%92, %c0_47] : memref<64x128xf32, #tpu.memory_space<vmem>>, vector<8x128xf32>
    %94 = arith.index_cast %91 : i32 to index
    %c0_48 = arith.constant 0 : index
    %95 = vector.load %arg13[%94, %c0_48] : memref<64x128xf32, #tpu.memory_space<vmem>>, vector<8x128xf32>
    %96 = arith.index_cast %91 : i32 to index
    %c0_49 = arith.constant 0 : index
    %97 = vector.load %arg14[%96, %c0_49] : memref<64x128xf32, #tpu.memory_space<vmem>>, vector<8x128xf32>
    %98 = arith.subf %93, %86 : vector<8x128xf32>
    %99 = arith.mulf %95, %98 : vector<8x128xf32>
    %100 = arith.addf %86, %99 : vector<8x128xf32>
    %101 = arith.mulf %97, %100 : vector<8x128xf32>
    %102 = arith.index_cast %91 : i32 to index
    %c0_50 = arith.constant 0 : index
    %103 = vector.load %arg10[%102, %c0_50] : memref<64x128xf32, #tpu.memory_space<vmem>>, vector<8x128xf32>
    tpu.vector_store %arg10[%102, %c0_50], %101 {strides = array<i32>} : memref<64x128xf32, #tpu.memory_space<vmem>>, vector<8x128xf32>,
    %c5_i32 = arith.constant 5 : i32
    %c8_i32_51 = arith.constant 8 : i32
    %104 = arith.muli %c5_i32, %c8_i32_51 : i32
    %105 = tpu.assume_multiple %104, 8 : i32
    %106 = arith.index_cast %105 : i32 to index
    %c0_52 = arith.constant 0 : index
    %107 = vector.load %arg12[%106, %c0_52] : memref<64x128xf32, #tpu.memory_space<vmem>>, vector<8x128xf32>
    %108 = arith.index_cast %105 : i32 to index
    %c0_53 = arith.constant 0 : index
    %109 = vector.load %arg13[%108, %c0_53] : memref<64x128xf32, #tpu.memory_space<vmem>>, vector<8x128xf32>
    %110 = arith.index_cast %105 : i32 to index
    %c0_54 = arith.constant 0 : index
    %111 = vector.load %arg14[%110, %c0_54] : memref<64x128xf32, #tpu.memory_space<vmem>>, vector<8x128xf32>
    %112 = arith.subf %107, %100 : vector<8x128xf32>
    %113 = arith.mulf %109, %112 : vector<8x128xf32>
    %114 = arith.addf %100, %113 : vector<8x128xf32>
    %115 = arith.mulf %111, %114 : vector<8x128xf32>
    %116 = arith.index_cast %105 : i32 to index
    %c0_55 = arith.constant 0 : index
    %117 = vector.load %arg10[%116, %c0_55] : memref<64x128xf32, #tpu.memory_space<vmem>>, vector<8x128xf32>
    tpu.vector_store %arg10[%116, %c0_55], %115 {strides = array<i32>} : memref<64x128xf32, #tpu.memory_space<vmem>>, vector<8x128xf32>,
    %c6_i32 = arith.constant 6 : i32
    %c8_i32_56 = arith.constant 8 : i32
    %118 = arith.muli %c6_i32, %c8_i32_56 : i32
    %119 = tpu.assume_multiple %118, 8 : i32
    %120 = arith.index_cast %119 : i32 to index
    %c0_57 = arith.constant 0 : index
    %121 = vector.load %arg12[%120, %c0_57] : memref<64x128xf32, #tpu.memory_space<vmem>>, vector<8x128xf32>
    %122 = arith.index_cast %119 : i32 to index
    %c0_58 = arith.constant 0 : index
    %123 = vector.load %arg13[%122, %c0_58] : memref<64x128xf32, #tpu.memory_space<vmem>>, vector<8x128xf32>
    %124 = arith.index_cast %119 : i32 to index
    %c0_59 = arith.constant 0 : index
    %125 = vector.load %arg14[%124, %c0_59] : memref<64x128xf32, #tpu.memory_space<vmem>>, vector<8x128xf32>
    %126 = arith.subf %121, %114 : vector<8x128xf32>
    %127 = arith.mulf %123, %126 : vector<8x128xf32>
    %128 = arith.addf %114, %127 : vector<8x128xf32>
    %129 = arith.mulf %125, %128 : vector<8x128xf32>
    %130 = arith.index_cast %119 : i32 to index
    %c0_60 = arith.constant 0 : index
    %131 = vector.load %arg10[%130, %c0_60] : memref<64x128xf32, #tpu.memory_space<vmem>>, vector<8x128xf32>
    tpu.vector_store %arg10[%130, %c0_60], %129 {strides = array<i32>} : memref<64x128xf32, #tpu.memory_space<vmem>>, vector<8x128xf32>,
    %c7_i32 = arith.constant 7 : i32
    %c8_i32_61 = arith.constant 8 : i32
    %132 = arith.muli %c7_i32, %c8_i32_61 : i32
    %133 = tpu.assume_multiple %132, 8 : i32
    %134 = arith.index_cast %133 : i32 to index
    %c0_62 = arith.constant 0 : index
    %135 = vector.load %arg12[%134, %c0_62] : memref<64x128xf32, #tpu.memory_space<vmem>>, vector<8x128xf32>
    %136 = arith.index_cast %133 : i32 to index
    %c0_63 = arith.constant 0 : index
    %137 = vector.load %arg13[%136, %c0_63] : memref<64x128xf32, #tpu.memory_space<vmem>>, vector<8x128xf32>
    %138 = arith.index_cast %133 : i32 to index
    %c0_64 = arith.constant 0 : index
    %139 = vector.load %arg14[%138, %c0_64] : memref<64x128xf32, #tpu.memory_space<vmem>>, vector<8x128xf32>
    %140 = arith.subf %135, %128 : vector<8x128xf32>
    %141 = arith.mulf %137, %140 : vector<8x128xf32>
    %142 = arith.addf %128, %141 : vector<8x128xf32>
    %143 = arith.mulf %139, %142 : vector<8x128xf32>
    %144 = arith.index_cast %133 : i32 to index
    %c0_65 = arith.constant 0 : index
    %145 = vector.load %arg10[%144, %c0_65] : memref<64x128xf32, #tpu.memory_space<vmem>>, vector<8x128xf32>
    tpu.vector_store %arg10[%144, %c0_65], %143 {strides = array<i32>} : memref<64x128xf32, #tpu.memory_space<vmem>>, vector<8x128xf32>,
    %c8_i32_66 = arith.constant 8 : i32
    %c0_67 = arith.constant 0 : index
    %c0_68 = arith.constant 0 : index
    %146 = vector.load %arg15[%c0_67, %c0_68] : memref<8x128xf32, #tpu.memory_space<vmem>>, vector<8x128xf32>
    tpu.vector_store %arg15[%c0_67, %c0_68], %142 {strides = array<i32>} : memref<8x128xf32, #tpu.memory_space<vmem>>, vector<8x128xf32>,
    %c0_i32_69 = arith.constant 0 : i32
    %147 = arith.cmpi eq, %arg1, %c0_i32_69 : i32
    %148 = arith.extui %147 : i1 to i32
    %c0_i32_70 = arith.constant 0 : i32
    %149 = arith.cmpi ne, %148, %c0_i32_70 : i32
    scf.if %149 {
      %c0_71 = arith.constant 0 : index
      %c0_72 = arith.constant 0 : index
      %150 = vector.load %arg11[%c0_71, %c0_72] : memref<8x128xf32, #tpu.memory_space<vmem>>, vector<8x128xf32>
      tpu.vector_store %arg11[%c0_71, %c0_72], %142 {strides = array<i32>} : memref<8x128xf32, #tpu.memory_space<vmem>>, vector<8x128xf32>,
    } else {
    }
    return
  }
  func.func @transform_0(%arg0: i32, %arg1: i32) -> (i32, i32) {
    %c0_i32 = arith.constant 0 : i32
    %c0_i32_0 = arith.constant 0 : i32
    return %arg1, %c0_i32 : i32, i32
  }
  func.func @transform_1(%arg0: i32, %arg1: i32) -> (i32, i32) {
    %c0_i32 = arith.constant 0 : i32
    %c0_i32_0 = arith.constant 0 : i32
    return %c0_i32, %arg0 : i32, i32
  }
  func.func @transform_2(%arg0: i32, %arg1: i32) -> (i32, i32) {
    %c0_i32 = arith.constant 0 : i32
    %c0_i32_0 = arith.constant 0 : i32
    return %c0_i32, %arg0 : i32, i32
  }
  func.func @transform_3(%arg0: i32, %arg1: i32) -> (i32, i32) {
    %c0_i32 = arith.constant 0 : i32
    %c0_i32_0 = arith.constant 0 : i32
    return %c0_i32, %arg0 : i32, i32
  }
  func.func @transform_4(%arg0: i32, %arg1: i32) -> (i32, i32) {
    %c0_i32 = arith.constant 0 : i32
    %c0_i32_0 = arith.constant 0 : i32
    return %c0_i32, %arg0 : i32, i32
  }
  func.func @transform_5(%arg0: i32, %arg1: i32) -> (i32, i32) {
    %c0_i32 = arith.constant 0 : i32
    %c0_i32_0 = arith.constant 0 : i32
    return %c0_i32, %arg0 : i32, i32
  }
  func.func @transform_6(%arg0: i32, %arg1: i32) -> (i32, i32) {
    %c0_i32 = arith.constant 0 : i32
    %c0_i32_0 = arith.constant 0 : i32
    return %c0_i32, %arg0 : i32, i32
  }
  func.func @transform_7(%arg0: i32, %arg1: i32) -> (i32, i32) {
    %c0_i32 = arith.constant 0 : i32
    %c0_i32_0 = arith.constant 0 : i32
    return %c0_i32, %arg0 : i32, i32
  }
  func.func @transform_8(%arg0: i32, %arg1: i32) -> (i32, i32) {
    %c0_i32 = arith.constant 0 : i32
    return %arg1, %arg0 : i32, i32
  }
  func.func @transform_9(%arg0: i32, %arg1: i32) -> (i32, i32) {
    %c0_i32 = arith.constant 0 : i32
    %c0_i32_0 = arith.constant 0 : i32
    return %c0_i32, %arg0 : i32, i32
  }
}

</mosaic_0001>

<llo_original>
// kernel: tpu_custom_call.1
$region0: #{tpu_custom_call.1}
  #allocation0 [shape = 'u32[]', space=smem, size = 0x4, offset = 0x4, fixed_abs, tag = 'smem constant byte address 0x4 - core index']
  #allocation1 [shape = 'u32[144,128]{1,0:T(1,128)}', space=vmem, size = 0x12000, scoped, tag = 'internal scratch']
  #allocation2 [shape = 'f32[64,128]{1,0:T(8,128)}', space=vmem, size = 0x8000, scoped, tag = 'scratch operand']
  #allocation3 [shape = 'f32[64,128]{1,0:T(8,128)}', space=vmem, size = 0x8000, scoped, tag = 'scratch operand']
  #allocation4 [shape = 'f32[64,128]{1,0:T(8,128)}', space=vmem, size = 0x8000, scoped, tag = 'scratch operand']
  #allocation5 [shape = 'f32[8,128]{1,0:T(8,128)}', space=vmem, size = 0x1000, scoped, tag = 'scratch operand']
  %s0 = inlined_call_operand.hbm [shape: f32[64,32], index: 0, kind: input, shape index: {}]
  %s1 = inlined_call_operand.hbm [shape: f32[32,128], index: 1, kind: input, shape index: {}]
  %s2 = inlined_call_operand.hbm [shape: f32[32,128], index: 2, kind: input, shape index: {}]
  %s3 = inlined_call_operand.hbm [shape: f32[32,128], index: 3, kind: input, shape index: {}]
  %s4 = inlined_call_operand.hbm [shape: f32[1,128], index: 4, kind: input, shape index: {}]
  %s5 = inlined_call_operand.hbm [shape: f32[1,128], index: 5, kind: input, shape index: {}]
  %s6 = inlined_call_operand.hbm [shape: f32[1,128], index: 6, kind: input, shape index: {}]
  %s7 = inlined_call_operand.hbm [shape: f32[8,128], index: 7, kind: input, shape index: {}]
  %s8 = inlined_call_operand.hbm [shape: f32[64,128], index: 8, kind: output, shape index: {0}]
  %s9 = inlined_call_operand.hbm [shape: f32[8,128], index: 9, kind: output, shape index: {1}]
  %10 = xla_tuple %s8, %s9
  %s11 = sld [smem:[#allocation0]]
  $region90: #{tpu_custom_call.1} parent=0
    _
  %s13 = ssub.s32 1, %s11
  %s14 = scalar_select 0, %s13, %s11
  $region1: #{tpu_custom_call.1} parent=0
    #allocation6 [shape = 'u8[32768]{0}', space=vmem, size = 0x8000, scoped, tag = 'input window, operand 0, single buffered']
    #allocation7 [shape = 's32[1]{0}', space=sflag, size = 0x4, scoped, tag = 'scoped memory for tpu_custom_call.1']
    #allocation8 [shape = 's32[1]{0}', space=sflag, size = 0x4, scoped, tag = 'scoped memory for tpu_custom_call.1']
    #allocation9 [shape = 'u8[16384]{0}', space=vmem, size = 0x4000, scoped, tag = 'input window, operand 1, single buffered']
    #allocation10 [shape = 's32[1]{0}', space=sflag, size = 0x4, scoped, tag = 'scoped memory for tpu_custom_call.1']
    #allocation11 [shape = 'u8[16384]{0}', space=vmem, size = 0x4000, scoped, tag = 'input window, operand 2, single buffered']
    #allocation12 [shape = 'u8[16384]{0}', space=vmem, size = 0x4000, scoped, tag = 'input window, operand 3, single buffered']
    #allocation13 [shape = 's32[1]{0}', space=sflag, size = 0x4, scoped, tag = 'scoped memory for tpu_custom_call.1']
    #allocation14 [shape = 'u8[512]{0}', space=vmem, size = 0x400, scoped, tag = 'input window, operand 4, single buffered']
    #allocation15 [shape = 'u8[512]{0}', space=vmem, size = 0x400, scoped, tag = 'input window, operand 5, single buffered']
    #allocation16 [shape = 's32[1]{0}', space=sflag, size = 0x4, scoped, tag = 'scoped memory for tpu_custom_call.1']
    #allocation17 [shape = 'u8[512]{0}', space=vmem, size = 0x400, scoped, tag = 'input window, operand 6, single buffered']
    #allocation18 [shape = 'u8[4096]{0}', space=vmem, size = 0x1000, scoped, tag = 'input window, operand 7, single buffered']
    #allocation19 [shape = 's32[1]{0}', space=sflag, size = 0x4, scoped, tag = 'scoped memory for tpu_custom_call.1']
    #allocation20 [shape = 'u8[32768]{0}', space=vmem, size = 0x8000, scoped, tag = 'output window, operand 0, single buffered']
    #allocation21 [shape = 'u8[4096]{0}', space=vmem, size = 0x1000, scoped, tag = 'output window, operand 1, single buffered']
    #allocation22 [shape = 's32[1]{0}', space=sflag, size = 0x4, scoped, tag = 'scoped memory for tpu_custom_call.1']
    %15 = vsyncpa [#allocation7], 0
    %16 = vsyncpa [#allocation10], 0
    %17 = vsyncpa [#allocation13], 0
    %18 = vsyncpa [#allocation16], 0
    %19 = vsyncpa [#allocation19], 0
    %20 = vsyncpa [#allocation8], 0
    %21 = vsyncpa [#allocation22], 0
    // Predicated region
    $region2: #{tpu_custom_call.1} parent=1 // pred_check
      _
    $region3: #{tpu_custom_call.1} parent=1 // pred_check_branch
      %23 = sbr.rel (0) target = $region5
    $region4: #{tpu_custom_call.1} parent=1 // pred_region
      %s25 = ssub.s32 1024, 1024
      %26 = vsyncadd [#allocation7], %s25
      %s27 = sshll.u32 [#allocation6], 4
      %s28 = int_to_ptr.vmem [resolvable:$true] %s27
      %33 = dma.hbm_to_vmem [thread:$0]  %s0, 1024, %s28, [#allocation7], 128, 128, 8
    $region5: #{tpu_custom_call.1} parent=1 // pred_fallthru
      _
    // Predicated region
    $region6: #{tpu_custom_call.1} parent=1 // pred_check
      _
    $region7: #{tpu_custom_call.1} parent=1 // pred_check_branch
      %35 = sbr.rel (0) target = $region9
    $region8: #{tpu_custom_call.1} parent=1 // pred_region
      %s37 = ssub.s32 512, 512
      %38 = vsyncadd [#allocation10], %s37
      %s39 = sshll.u32 [#allocation9], 4
      %s40 = int_to_ptr.vmem [resolvable:$true] %s39
      %45 = dma.hbm_to_vmem [thread:$0]  %s1, 512, %s40, [#allocation10], 128, 128, 8
    $region9: #{tpu_custom_call.1} parent=1 // pred_fallthru
      _
    // Predicated region
    $region10: #{tpu_custom_call.1} parent=1 // pred_check
      _
    $region11: #{tpu_custom_call.1} parent=1 // pred_check_branch
      %47 = sbr.rel (0) target = $region13
    $region12: #{tpu_custom_call.1} parent=1 // pred_region
      %s49 = ssub.s32 512, 512
      %50 = vsyncadd [#allocation10], %s49
      %s51 = sshll.u32 [#allocation11], 4
      %s52 = int_to_ptr.vmem [resolvable:$true] %s51
      %57 = dma.hbm_to_vmem [thread:$0]  %s2, 512, %s52, [#allocation10], 128, 128, 8
    $region13: #{tpu_custom_call.1} parent=1 // pred_fallthru
      _
    // Predicated region
    $region14: #{tpu_custom_call.1} parent=1 // pred_check
      _
    $region15: #{tpu_custom_call.1} parent=1 // pred_check_branch
      %59 = sbr.rel (0) target = $region17
    $region16: #{tpu_custom_call.1} parent=1 // pred_region
      %s61 = ssub.s32 512, 512
      %62 = vsyncadd [#allocation13], %s61
      %s63 = sshll.u32 [#allocation12], 4
      %s64 = int_to_ptr.vmem [resolvable:$true] %s63
      %69 = dma.hbm_to_vmem [thread:$0]  %s3, 512, %s64, [#allocation13], 128, 128, 8
    $region17: #{tpu_custom_call.1} parent=1 // pred_fallthru
      _
    // Predicated region
    $region18: #{tpu_custom_call.1} parent=1 // pred_check
      _
    $region19: #{tpu_custom_call.1} parent=1 // pred_check_branch
      %71 = sbr.rel (0) target = $region21
    $region20: #{tpu_custom_call.1} parent=1 // pred_region
      %s73 = ssub.s32 16, 16
      %74 = vsyncadd [#allocation13], %s73
      %s76 = sshll.u32 [#allocation14], 4
      %s77 = int_to_ptr.vmem [resolvable:$true] %s76
      %79 = dma.hbm_to_vmem [thread:$0]  %s4, 16, %s77, [#allocation13]
    $region21: #{tpu_custom_call.1} parent=1 // pred_fallthru
      _
    // Predicated region
    $region22: #{tpu_custom_call.1} parent=1 // pred_check
      _
    $region23: #{tpu_custom_call.1} parent=1 // pred_check_branch
      %81 = sbr.rel (0) target = $region25
    $region24: #{tpu_custom_call.1} parent=1 // pred_region
      %s83 = ssub.s32 16, 16
      %84 = vsyncadd [#allocation16], %s83
      %s86 = sshll.u32 [#allocation15], 4
      %s87 = int_to_ptr.vmem [resolvable:$true] %s86
      %89 = dma.hbm_to_vmem [thread:$0]  %s5, 16, %s87, [#allocation16]
    $region25: #{tpu_custom_call.1} parent=1 // pred_fallthru
      _
    // Predicated region
    $region26: #{tpu_custom_call.1} parent=1 // pred_check
      _
    $region27: #{tpu_custom_call.1} parent=1 // pred_check_branch
      %91 = sbr.rel (0) target = $region29
    $region28: #{tpu_custom_call.1} parent=1 // pred_region
      %s93 = ssub.s32 16, 16
      %94 = vsyncadd [#allocation16], %s93
      %s96 = sshll.u32 [#allocation17], 4
      %s97 = int_to_ptr.vmem [resolvable:$true] %s96
      %99 = dma.hbm_to_vmem [thread:$0]  %s6, 16, %s97, [#allocation16]
    $region29: #{tpu_custom_call.1} parent=1 // pred_fallthru
      _
    // Predicated region
    $region30: #{tpu_custom_call.1} parent=1 // pred_check
      _
    $region31: #{tpu_custom_call.1} parent=1 // pred_check_branch
      %101 = sbr.rel (0) target = $region33
    $region32: #{tpu_custom_call.1} parent=1 // pred_region
      %s103 = ssub.s32 128, 128
      %104 = vsyncadd [#allocation19], %s103
      %s106 = sshll.u32 [#allocation18], 4
      %s107 = int_to_ptr.vmem [resolvable:$true] %s106
      %109 = dma.hbm_to_vmem [thread:$0]  %s7, 128, %s107, [#allocation19]
    $region33: #{tpu_custom_call.1} parent=1 // pred_fallthru
      _
    // Predicated region
    $region34: #{tpu_custom_call.1} parent=1 // pred_check
      _
    $region35: #{tpu_custom_call.1} parent=1 // pred_check_branch
      %111 = sbr.rel (0) target = $region37
    $region36: #{tpu_custom_call.1} parent=1 // pred_region
      %112 = dma.done [#allocation7], 1024
    $region37: #{tpu_custom_call.1} parent=1 // pred_fallthru
      _
    // Predicated region
    $region38: #{tpu_custom_call.1} parent=1 // pred_check
      _
    $region39: #{tpu_custom_call.1} parent=1 // pred_check_branch
      %114 = sbr.rel (0) target = $region41
    $region40: #{tpu_custom_call.1} parent=1 // pred_region
      %115 = dma.done [#allocation10], 512
    $region41: #{tpu_custom_call.1} parent=1 // pred_fallthru
      _
    // Predicated region
    $region42: #{tpu_custom_call.1} parent=1 // pred_check
      _
    $region43: #{tpu_custom_call.1} parent=1 // pred_check_branch
      %117 = sbr.rel (0) target = $region45
    $region44: #{tpu_custom_call.1} parent=1 // pred_region
      %118 = dma.done [#allocation10], 512
    $region45: #{tpu_custom_call.1} parent=1 // pred_fallthru
      _
    // Predicated region
    $region46: #{tpu_custom_call.1} parent=1 // pred_check
      _
    $region47: #{tpu_custom_call.1} parent=1 // pred_check_branch
      %120 = sbr.rel (0) target = $region49
    $region48: #{tpu_custom_call.1} parent=1 // pred_region
      %121 = dma.done [#allocation13], 512
    $region49: #{tpu_custom_call.1} parent=1 // pred_fallthru
      _
    // Predicated region
    $region50: #{tpu_custom_call.1} parent=1 // pred_check
      _
    $region51: #{tpu_custom_call.1} parent=1 // pred_check_branch
      %123 = sbr.rel (0) target = $region53
    $region52: #{tpu_custom_call.1} parent=1 // pred_region
      %124 = dma.done [#allocation13], 16
    $region53: #{tpu_custom_call.1} parent=1 // pred_fallthru
      _
    // Predicated region
    $region54: #{tpu_custom_call.1} parent=1 // pred_check
      _
    $region55: #{tpu_custom_call.1} parent=1 // pred_check_branch
      %126 = sbr.rel (0) target = $region57
    $region56: #{tpu_custom_call.1} parent=1 // pred_region
      %127 = dma.done [#allocation16], 16
    $region57: #{tpu_custom_call.1} parent=1 // pred_fallthru
      _
    // Predicated region
    $region58: #{tpu_custom_call.1} parent=1 // pred_check
      _
    $region59: #{tpu_custom_call.1} parent=1 // pred_check_branch
      %129 = sbr.rel (0) target = $region61
    $region60: #{tpu_custom_call.1} parent=1 // pred_region
      %130 = dma.done [#allocation16], 16
    $region61: #{tpu_custom_call.1} parent=1 // pred_fallthru
      _
    // Predicated region
    $region62: #{tpu_custom_call.1} parent=1 // pred_check
      _
    $region63: #{tpu_custom_call.1} parent=1 // pred_check_branch
      %132 = sbr.rel (0) target = $region65
    $region64: #{tpu_custom_call.1} parent=1 // pred_region
      %133 = dma.done [#allocation19], 128
    $region65: #{tpu_custom_call.1} parent=1 // pred_fallthru
      _
    %p134 = scmp.eq.s32.totalorder 0, 0
    // Predicated region
    $region66: #{tpu_custom_call.1} parent=1 // pred_check
      %p135 = pneg %p134
    $region67: #{tpu_custom_call.1} parent=1 // pred_check_branch
      %137 = sbr.rel (%p135) target = $region69
    $region68: #{tpu_custom_call.1} parent=1 // pred_region
      %v138 = vld [vmem:[#allocation18] sm:$0xff]
      %139 = vst [vmem:[#allocation5] sm:$0xff] %v138
    $region69: #{tpu_custom_call.1} parent=1 // pred_fallthru
      _
    %v140 = vld [vmem:[#allocation6] sm:$0xff]
    %v141 = vld [vmem:[#allocation6 + $0x8] sm:$0xff]
    %v142 = vld [vmem:[#allocation6 + $0x10] sm:$0xff]
    %v143 = vld [vmem:[#allocation6 + $0x18] sm:$0xff]
    %v144 = vld [vmem:[#allocation6 + $0x20] sm:$0xff]
    %v145 = vld [vmem:[#allocation6 + $0x28] sm:$0xff]
    %v146 = vld [vmem:[#allocation6 + $0x30] sm:$0xff]
    %v147 = vld [vmem:[#allocation6 + $0x38] sm:$0xff]
    %v148 = vld [vmem:[#allocation9] sm:$0xff]
    %v149 = vld [vmem:[#allocation9 + $0x8] sm:$0xff]
    %v150 = vld [vmem:[#allocation9 + $0x10] sm:$0xff]
    %v151 = vld [vmem:[#allocation9 + $0x18] sm:$0xff]
    %v152 = vld [vmem:[#allocation14] sm:$0x1]
    %v154 = vlaneseq
    %v155 = vshrl.u32 %v154, 7
    %v156 = vsub.s32 0, %v155
    %v157 = vrot.slane %v152, %v156
    %vm159 = vcmask 261120
    %v161 = vsel %vm159, %v140, 0
    %v164 = vsel %vm159, %v141, 0
    %v167 = vsel %vm159, %v142, 0
    %v170 = vsel %vm159, %v143, 0
    %v173 = vsel %vm159, %v144, 0
    %v176 = vsel %vm159, %v145, 0
    %v179 = vsel %vm159, %v146, 0
    %v182 = vsel %vm159, %v147, 0
    %184 = vmatprep.subr.mxu0 0.0
    %185 = vmatpush1.msra.mxu0 %v148
    %186 = vmatprep.subr.mxu0 0.0
    %187 = vmatpush1.msra.mxu0 %v149
    %188 = vmatprep.subr.mxu0 0.0
    %189 = vmatpush1.msra.mxu0 %v150
    %190 = vmatprep.subr.mxu0 0.0
    %191 = vmatpush1.msra.mxu0 %v151
    %192 = vmatprep.subr.mxu0 0.0
    %193 = vmatpush1.msra.mxu0 0.0
    %194 = vmatprep.subr.mxu0 0.0
    %195 = vmatpush1.msra.mxu0 0.0
    %196 = vmatprep.subr.mxu0 0.0
    %197 = vmatpush1.msra.mxu0 0.0
    %198 = vmatprep.subr.mxu0 0.0
    %199 = vmatpush1.msra.mxu0 0.0
    %200 = vmatprep.subr.mxu0 0.0
    %201 = vmatpush1.msra.mxu0 0.0
    %202 = vmatprep.subr.mxu0 0.0
    %203 = vmatpush1.msra.mxu0 0.0
    %204 = vmatprep.subr.mxu0 0.0
    %205 = vmatpush1.msra.mxu0 0.0
    %206 = vmatprep.subr.mxu0 0.0
    %207 = vmatpush1.msra.mxu0 0.0
    %208 = vmatprep.subr.mxu0 0.0
    %209 = vmatpush1.msra.mxu0 0.0
    %210 = vmatprep.subr.mxu0 0.0
    %211 = vmatpush1.msra.mxu0 0.0
    %212 = vmatprep.subr.mxu0 0.0
    %213 = vmatpush1.msra.mxu0 0.0
    %214 = vmatprep.subr.mxu0 0.0
    %215 = vmatpush1.msra.mxu0 0.0
    %216 = vmatprep.subr.mxu0 0.0
    %217 = vmatpush1.msra.mxu0 0.0
    %218 = vmatprep.subr.mxu0 0.0
    %219 = vmatpush1.msra.mxu0 0.0
    %220 = vmatprep.subr.mxu0 0.0
    %221 = vmatpush1.msra.mxu0 0.0
    %222 = vmatprep.subr.mxu0 0.0
    %223 = vmatpush1.msra.mxu0 0.0
    %224 = vmatprep.subr.mxu0 0.0
    %225 = vmatpush1.msra.mxu0 0.0
    %226 = vmatprep.subr.mxu0 0.0
    %227 = vmatpush1.msra.mxu0 0.0
    %228 = vmatprep.subr.mxu0 0.0
    %229 = vmatpush1.msra.mxu0 0.0
    %230 = vmatprep.subr.mxu0 0.0
    %231 = vmatpush1.msra.mxu0 0.0
    %232 = vmatprep.subr.mxu0 0.0
    %233 = vmatpush1.msra.mxu0 0.0
    %234 = vmatprep.subr.mxu0 0.0
    %235 = vmatpush1.msra.mxu0 0.0
    %236 = vmatprep.subr.mxu0 0.0
    %237 = vmatpush1.msra.mxu0 0.0
    %238 = vmatprep.subr.mxu0 0.0
    %239 = vmatpush1.msra.mxu0 0.0
    %240 = vmatprep.subr.mxu0 0.0
    %241 = vmatpush1.msra.mxu0 0.0
    %242 = vmatprep.subr.mxu0 0.0
    %243 = vmatpush1.msra.mxu0 0.0
    %244 = vmatprep.subr.mxu0 0.0
    %245 = vmatpush1.msra.mxu0 0.0
    %246 = vmatprep.subr.mxu0 0.0
    %247 = vmatpush1.msra.mxu0 0.0
    %248 = vmatprep.mubr.f32.mxu0 0.0
    %249 = vmatmul.mubr.f32.gmra.mrb[0].mxu0 %v161
    %v250 = vpop.f32.mrb[0].mxu0
    %v251 = vadd.f32 %v157, %v250
    %v252 = vpop.f32.mrb[0].mxu0
    %253 = vmatprep.mubr.f32.mxu0 0.0
    %254 = vmatmul.mubr.f32.gmra.mrb[0].mxu0 %v164
    %v255 = vpop.f32.mrb[0].mxu0
    %v256 = vadd.f32 %v157, %v255
    %v257 = vpop.f32.mrb[0].mxu0
    %258 = vmatprep.mubr.f32.mxu0 0.0
    %259 = vmatmul.mubr.f32.gmra.mrb[0].mxu0 %v167
    %v260 = vpop.f32.mrb[0].mxu0
    %v261 = vadd.f32 %v157, %v260
    %v262 = vpop.f32.mrb[0].mxu0
    %263 = vmatprep.mubr.f32.mxu0 0.0
    %264 = vmatmul.mubr.f32.gmra.mrb[0].mxu0 %v170
    %v265 = vpop.f32.mrb[0].mxu0
    %v266 = vadd.f32 %v157, %v265
    %v267 = vpop.f32.mrb[0].mxu0
    %268 = vmatprep.mubr.f32.mxu0 0.0
    %269 = vmatmul.mubr.f32.gmra.mrb[0].mxu0 %v173
    %v270 = vpop.f32.mrb[0].mxu0
    %v271 = vadd.f32 %v157, %v270
    %v272 = vpop.f32.mrb[0].mxu0
    %273 = vmatprep.mubr.f32.mxu0 0.0
    %274 = vmatmul.mubr.f32.gmra.mrb[0].mxu0 %v176
    %v275 = vpop.f32.mrb[0].mxu0
    %v276 = vadd.f32 %v157, %v275
    %v277 = vpop.f32.mrb[0].mxu0
    %278 = vmatprep.mubr.f32.mxu0 0.0
    %279 = vmatmul.mubr.f32.gmra.mrb[0].mxu0 %v179
    %v280 = vpop.f32.mrb[0].mxu0
    %v281 = vadd.f32 %v157, %v280
    %v282 = vpop.f32.mrb[0].mxu0
    %283 = vmatprep.mubr.f32.mxu0 0.0
    %284 = vmatmul.mubr.f32.gmra.mrb[0].mxu0 %v182
    %v285 = vpop.f32.mrb[0].mxu0
    %v286 = vadd.f32 %v157, %v285
    %v287 = vpop.f32.mrb[0].mxu0
    %288 = vdwg.mxu0
    %v289 = vtanh.pop %v251
    %v290 = vtanh.pop %v256
    %v291 = vtanh.pop %v261
    %v292 = vtanh.pop %v266
    %v293 = vtanh.pop %v271
    %v294 = vtanh.pop %v276
    %v295 = vtanh.pop %v281
    %v296 = vtanh.pop %v286
    %297 = vst [vmem:[#allocation2] sm:$0xff] %v289
    %298 = vst [vmem:[#allocation2 + $0x8] sm:$0xff] %v290
    %299 = vst [vmem:[#allocation2 + $0x10] sm:$0xff] %v291
    %300 = vst [vmem:[#allocation2 + $0x18] sm:$0xff] %v292
    %301 = vst [vmem:[#allocation2 + $0x20] sm:$0xff] %v293
    %302 = vst [vmem:[#allocation2 + $0x28] sm:$0xff] %v294
    %303 = vst [vmem:[#allocation2 + $0x30] sm:$0xff] %v295
    %304 = vst [vmem:[#allocation2 + $0x38] sm:$0xff] %v296
    %v305 = vld [vmem:[#allocation11] sm:$0xff]
    %v306 = vld [vmem:[#allocation11 + $0x8] sm:$0xff]
    %v307 = vld [vmem:[#allocation11 + $0x10] sm:$0xff]
    %v308 = vld [vmem:[#allocation11 + $0x18] sm:$0xff]
    %v309 = vld [vmem:[#allocation15] sm:$0x1]
    %v311 = vlaneseq
    %v312 = vshrl.u32 %v311, 7
    %v313 = vsub.s32 0, %v312
    %v314 = vrot.slane %v309, %v313
    %316 = vmatprep.subr.mxu0 0.0
    %317 = vmatpush1.msra.mxu0 %v305
    %318 = vmatprep.subr.mxu0 0.0
    %319 = vmatpush1.msra.mxu0 %v306
    %320 = vmatprep.subr.mxu0 0.0
    %321 = vmatpush1.msra.mxu0 %v307
    %322 = vmatprep.subr.mxu0 0.0
    %323 = vmatpush1.msra.mxu0 %v308
    %324 = vmatprep.subr.mxu0 0.0
    %325 = vmatpush1.msra.mxu0 0.0
    %326 = vmatprep.subr.mxu0 0.0
    %327 = vmatpush1.msra.mxu0 0.0
    %328 = vmatprep.subr.mxu0 0.0
    %329 = vmatpush1.msra.mxu0 0.0
    %330 = vmatprep.subr.mxu0 0.0
    %331 = vmatpush1.msra.mxu0 0.0
    %332 = vmatprep.subr.mxu0 0.0
    %333 = vmatpush1.msra.mxu0 0.0
    %334 = vmatprep.subr.mxu0 0.0
    %335 = vmatpush1.msra.mxu0 0.0
    %336 = vmatprep.subr.mxu0 0.0
    %337 = vmatpush1.msra.mxu0 0.0
    %338 = vmatprep.subr.mxu0 0.0
    %339 = vmatpush1.msra.mxu0 0.0
    %340 = vmatprep.subr.mxu0 0.0
    %341 = vmatpush1.msra.mxu0 0.0
    %342 = vmatprep.subr.mxu0 0.0
    %343 = vmatpush1.msra.mxu0 0.0
    %344 = vmatprep.subr.mxu0 0.0
    %345 = vmatpush1.msra.mxu0 0.0
    %346 = vmatprep.subr.mxu0 0.0
    %347 = vmatpush1.msra.mxu0 0.0
    %348 = vmatprep.subr.mxu0 0.0
    %349 = vmatpush1.msra.mxu0 0.0
    %350 = vmatprep.subr.mxu0 0.0
    %351 = vmatpush1.msra.mxu0 0.0
    %352 = vmatprep.subr.mxu0 0.0
    %353 = vmatpush1.msra.mxu0 0.0
    %354 = vmatprep.subr.mxu0 0.0
    %355 = vmatpush1.msra.mxu0 0.0
    %356 = vmatprep.subr.mxu0 0.0
    %357 = vmatpush1.msra.mxu0 0.0
    %358 = vmatprep.subr.mxu0 0.0
    %359 = vmatpush1.msra.mxu0 0.0
    %360 = vmatprep.subr.mxu0 0.0
    %361 = vmatpush1.msra.mxu0 0.0
    %362 = vmatprep.subr.mxu0 0.0
    %363 = vmatpush1.msra.mxu0 0.0
    %364 = vmatprep.subr.mxu0 0.0
    %365 = vmatpush1.msra.mxu0 0.0
    %366 = vmatprep.subr.mxu0 0.0
    %367 = vmatpush1.msra.mxu0 0.0
    %368 = vmatprep.subr.mxu0 0.0
    %369 = vmatpush1.msra.mxu0 0.0
    %370 = vmatprep.subr.mxu0 0.0
    %371 = vmatpush1.msra.mxu0 0.0
    %372 = vmatprep.subr.mxu0 0.0
    %373 = vmatpush1.msra.mxu0 0.0
    %374 = vmatprep.subr.mxu0 0.0
    %375 = vmatpush1.msra.mxu0 0.0
    %376 = vmatprep.subr.mxu0 0.0
    %377 = vmatpush1.msra.mxu0 0.0
    %378 = vmatprep.subr.mxu0 0.0
    %379 = vmatpush1.msra.mxu0 0.0
    %380 = vmatprep.mubr.f32.mxu0 0.0
    %381 = vmatmul.mubr.f32.gmra.mrb[0].mxu0 %v161
    %v382 = vpop.f32.mrb[0].mxu0
    %v383 = vadd.f32 %v314, %v382
    %v384 = vpop.f32.mrb[0].mxu0
    %385 = vmatprep.mubr.f32.mxu0 0.0
    %386 = vmatmul.mubr.f32.gmra.mrb[0].mxu0 %v164
    %v387 = vpop.f32.mrb[0].mxu0
    %v388 = vadd.f32 %v314, %v387
    %v389 = vpop.f32.mrb[0].mxu0
    %390 = vmatprep.mubr.f32.mxu0 0.0
    %391 = vmatmul.mubr.f32.gmra.mrb[0].mxu0 %v167
    %v392 = vpop.f32.mrb[0].mxu0
    %v393 = vadd.f32 %v314, %v392
    %v394 = vpop.f32.mrb[0].mxu0
    %395 = vmatprep.mubr.f32.mxu0 0.0
    %396 = vmatmul.mubr.f32.gmra.mrb[0].mxu0 %v170
    %v397 = vpop.f32.mrb[0].mxu0
    %v398 = vadd.f32 %v314, %v397
    %v399 = vpop.f32.mrb[0].mxu0
    %400 = vmatprep.mubr.f32.mxu0 0.0
    %401 = vmatmul.mubr.f32.gmra.mrb[0].mxu0 %v173
    %v402 = vpop.f32.mrb[0].mxu0
    %v403 = vadd.f32 %v314, %v402
    %v404 = vpop.f32.mrb[0].mxu0
    %405 = vmatprep.mubr.f32.mxu0 0.0
    %406 = vmatmul.mubr.f32.gmra.mrb[0].mxu0 %v176
    %v407 = vpop.f32.mrb[0].mxu0
    %v408 = vadd.f32 %v314, %v407
    %v409 = vpop.f32.mrb[0].mxu0
    %410 = vmatprep.mubr.f32.mxu0 0.0
    %411 = vmatmul.mubr.f32.gmra.mrb[0].mxu0 %v179
    %v412 = vpop.f32.mrb[0].mxu0
    %v413 = vadd.f32 %v314, %v412
    %v414 = vpop.f32.mrb[0].mxu0
    %415 = vmatprep.mubr.f32.mxu0 0.0
    %416 = vmatmul.mubr.f32.gmra.mrb[0].mxu0 %v182
    %v417 = vpop.f32.mrb[0].mxu0
    %v418 = vadd.f32 %v314, %v417
    %v419 = vpop.f32.mrb[0].mxu0
    %420 = vdwg.mxu0
    %v421 = vxor.u32 %v383, 2147483648
    %v422 = vxor.u32 %v388, 2147483648
    %v423 = vxor.u32 %v393, 2147483648
    %v424 = vxor.u32 %v398, 2147483648
    %v425 = vxor.u32 %v403, 2147483648
    %v426 = vxor.u32 %v408, 2147483648
    %v427 = vxor.u32 %v413, 2147483648
    %v428 = vxor.u32 %v418, 2147483648
    %v429 = vmul.f32 %v421, 1.442695
    %v430 = vpow.pop %v429
    %v431 = vmul.f32 %v422, 1.442695
    %v432 = vpow.pop %v431
    %v433 = vmul.f32 %v423, 1.442695
    %v434 = vpow.pop %v433
    %v435 = vmul.f32 %v424, 1.442695
    %v436 = vpow.pop %v435
    %v437 = vmul.f32 %v425, 1.442695
    %v438 = vpow.pop %v437
    %v439 = vmul.f32 %v426, 1.442695
    %v440 = vpow.pop %v439
    %v441 = vmul.f32 %v427, 1.442695
    %v442 = vpow.pop %v441
    %v443 = vmul.f32 %v428, 1.442695
    %v444 = vpow.pop %v443
    %v445 = vadd.f32 %v430, 1.0
    %v446 = vadd.f32 %v432, 1.0
    %v447 = vadd.f32 %v434, 1.0
    %v448 = vadd.f32 %v436, 1.0
    %v449 = vadd.f32 %v438, 1.0
    %v450 = vadd.f32 %v440, 1.0
    %v451 = vadd.f32 %v442, 1.0
    %v452 = vadd.f32 %v444, 1.0
    %v453 = vrcp.pop %v445
    %v454 = vmul.f32 1.0, %v453
    %v455 = vrcp.pop %v446
    %v456 = vmul.f32 1.0, %v455
    %v457 = vrcp.pop %v447
    %v458 = vmul.f32 1.0, %v457
    %v459 = vrcp.pop %v448
    %v460 = vmul.f32 1.0, %v459
    %v461 = vrcp.pop %v449
    %v462 = vmul.f32 1.0, %v461
    %v463 = vrcp.pop %v450
    %v464 = vmul.f32 1.0, %v463
    %v465 = vrcp.pop %v451
    %v466 = vmul.f32 1.0, %v465
    %v467 = vrcp.pop %v452
    %v468 = vmul.f32 1.0, %v467
    %469 = vst [vmem:[#allocation3] sm:$0xff] %v454
    %470 = vst [vmem:[#allocation3 + $0x8] sm:$0xff] %v456
    %471 = vst [vmem:[#allocation3 + $0x10] sm:$0xff] %v458
    %472 = vst [vmem:[#allocation3 + $0x18] sm:$0xff] %v460
    %473 = vst [vmem:[#allocation3 + $0x20] sm:$0xff] %v462
    %474 = vst [vmem:[#allocation3 + $0x28] sm:$0xff] %v464
    %475 = vst [vmem:[#allocation3 + $0x30] sm:$0xff] %v466
    %476 = vst [vmem:[#allocation3 + $0x38] sm:$0xff] %v468
    %v477 = vld [vmem:[#allocation12] sm:$0xff]
    %v478 = vld [vmem:[#allocation12 + $0x8] sm:$0xff]
    %v479 = vld [vmem:[#allocation12 + $0x10] sm:$0xff]
    %v480 = vld [vmem:[#allocation12 + $0x18] sm:$0xff]
    %v481 = vld [vmem:[#allocation17] sm:$0x1]
    %v483 = vlaneseq
    %v484 = vshrl.u32 %v483, 7
    %v485 = vsub.s32 0, %v484
    %v486 = vrot.slane %v481, %v485
    %488 = vmatprep.subr.mxu0 0.0
    %489 = vmatpush1.msra.mxu0 %v477
    %490 = vmatprep.subr.mxu0 0.0
    %491 = vmatpush1.msra.mxu0 %v478
    %492 = vmatprep.subr.mxu0 0.0
    %493 = vmatpush1.msra.mxu0 %v479
    %494 = vmatprep.subr.mxu0 0.0
    %495 = vmatpush1.msra.mxu0 %v480
    %496 = vmatprep.subr.mxu0 0.0
    %497 = vmatpush1.msra.mxu0 0.0
    %498 = vmatprep.subr.mxu0 0.0
    %499 = vmatpush1.msra.mxu0 0.0
    %500 = vmatprep.subr.mxu0 0.0
    %501 = vmatpush1.msra.mxu0 0.0
    %502 = vmatprep.subr.mxu0 0.0
    %503 = vmatpush1.msra.mxu0 0.0
    %504 = vmatprep.subr.mxu0 0.0
    %505 = vmatpush1.msra.mxu0 0.0
    %506 = vmatprep.subr.mxu0 0.0
    %507 = vmatpush1.msra.mxu0 0.0
    %508 = vmatprep.subr.mxu0 0.0
    %509 = vmatpush1.msra.mxu0 0.0
    %510 = vmatprep.subr.mxu0 0.0
    %511 = vmatpush1.msra.mxu0 0.0
    %512 = vmatprep.subr.mxu0 0.0
    %513 = vmatpush1.msra.mxu0 0.0
    %514 = vmatprep.subr.mxu0 0.0
    %515 = vmatpush1.msra.mxu0 0.0
    %516 = vmatprep.subr.mxu0 0.0
    %517 = vmatpush1.msra.mxu0 0.0
    %518 = vmatprep.subr.mxu0 0.0
    %519 = vmatpush1.msra.mxu0 0.0
    %520 = vmatprep.subr.mxu0 0.0
    %521 = vmatpush1.msra.mxu0 0.0
    %522 = vmatprep.subr.mxu0 0.0
    %523 = vmatpush1.msra.mxu0 0.0
    %524 = vmatprep.subr.mxu0 0.0
    %525 = vmatpush1.msra.mxu0 0.0
    %526 = vmatprep.subr.mxu0 0.0
    %527 = vmatpush1.msra.mxu0 0.0
    %528 = vmatprep.subr.mxu0 0.0
    %529 = vmatpush1.msra.mxu0 0.0
    %530 = vmatprep.subr.mxu0 0.0
    %531 = vmatpush1.msra.mxu0 0.0
    %532 = vmatprep.subr.mxu0 0.0
    %533 = vmatpush1.msra.mxu0 0.0
    %534 = vmatprep.subr.mxu0 0.0
    %535 = vmatpush1.msra.mxu0 0.0
    %536 = vmatprep.subr.mxu0 0.0
    %537 = vmatpush1.msra.mxu0 0.0
    %538 = vmatprep.subr.mxu0 0.0
    %539 = vmatpush1.msra.mxu0 0.0
    %540 = vmatprep.subr.mxu0 0.0
    %541 = vmatpush1.msra.mxu0 0.0
    %542 = vmatprep.subr.mxu0 0.0
    %543 = vmatpush1.msra.mxu0 0.0
    %544 = vmatprep.subr.mxu0 0.0
    %545 = vmatpush1.msra.mxu0 0.0
    %546 = vmatprep.subr.mxu0 0.0
    %547 = vmatpush1.msra.mxu0 0.0
    %548 = vmatprep.subr.mxu0 0.0
    %549 = vmatpush1.msra.mxu0 0.0
    %550 = vmatprep.subr.mxu0 0.0
    %551 = vmatpush1.msra.mxu0 0.0
    %552 = vmatprep.mubr.f32.mxu0 0.0
    %553 = vmatmul.mubr.f32.gmra.mrb[0].mxu0 %v161
    %v554 = vpop.f32.mrb[0].mxu0
    %v555 = vadd.f32 %v486, %v554
    %v556 = vpop.f32.mrb[0].mxu0
    %557 = vmatprep.mubr.f32.mxu0 0.0
    %558 = vmatmul.mubr.f32.gmra.mrb[0].mxu0 %v164
    %v559 = vpop.f32.mrb[0].mxu0
    %v560 = vadd.f32 %v486, %v559
    %v561 = vpop.f32.mrb[0].mxu0
    %562 = vmatprep.mubr.f32.mxu0 0.0
    %563 = vmatmul.mubr.f32.gmra.mrb[0].mxu0 %v167
    %v564 = vpop.f32.mrb[0].mxu0
    %v565 = vadd.f32 %v486, %v564
    %v566 = vpop.f32.mrb[0].mxu0
    %567 = vmatprep.mubr.f32.mxu0 0.0
    %568 = vmatmul.mubr.f32.gmra.mrb[0].mxu0 %v170
    %v569 = vpop.f32.mrb[0].mxu0
    %v570 = vadd.f32 %v486, %v569
    %v571 = vpop.f32.mrb[0].mxu0
    %572 = vmatprep.mubr.f32.mxu0 0.0
    %573 = vmatmul.mubr.f32.gmra.mrb[0].mxu0 %v173
    %v574 = vpop.f32.mrb[0].mxu0
    %v575 = vadd.f32 %v486, %v574
    %v576 = vpop.f32.mrb[0].mxu0
    %577 = vmatprep.mubr.f32.mxu0 0.0
    %578 = vmatmul.mubr.f32.gmra.mrb[0].mxu0 %v176
    %v579 = vpop.f32.mrb[0].mxu0
    %v580 = vadd.f32 %v486, %v579
    %v581 = vpop.f32.mrb[0].mxu0
    %582 = vmatprep.mubr.f32.mxu0 0.0
    %583 = vmatmul.mubr.f32.gmra.mrb[0].mxu0 %v179
    %v584 = vpop.f32.mrb[0].mxu0
    %v585 = vadd.f32 %v486, %v584
    %v586 = vpop.f32.mrb[0].mxu0
    %587 = vmatprep.mubr.f32.mxu0 0.0
    %588 = vmatmul.mubr.f32.gmra.mrb[0].mxu0 %v182
    %v589 = vpop.f32.mrb[0].mxu0
    %v590 = vadd.f32 %v486, %v589
    %v591 = vpop.f32.mrb[0].mxu0
    %592 = vdwg.mxu0
    %v593 = vxor.u32 %v555, 2147483648
    %v594 = vxor.u32 %v560, 2147483648
    %v595 = vxor.u32 %v565, 2147483648
    %v596 = vxor.u32 %v570, 2147483648
    %v597 = vxor.u32 %v575, 2147483648
    %v598 = vxor.u32 %v580, 2147483648
    %v599 = vxor.u32 %v585, 2147483648
    %v600 = vxor.u32 %v590, 2147483648
    %v601 = vmul.f32 %v593, 1.442695
    %v602 = vpow.pop %v601
    %v603 = vmul.f32 %v594, 1.442695
    %v604 = vpow.pop %v603
    %v605 = vmul.f32 %v595, 1.442695
    %v606 = vpow.pop %v605
    %v607 = vmul.f32 %v596, 1.442695
    %v608 = vpow.pop %v607
    %v609 = vmul.f32 %v597, 1.442695
    %v610 = vpow.pop %v609
    %v611 = vmul.f32 %v598, 1.442695
    %v612 = vpow.pop %v611
    %v613 = vmul.f32 %v599, 1.442695
    %v614 = vpow.pop %v613
    %v615 = vmul.f32 %v600, 1.442695
    %v616 = vpow.pop %v615
    %v617 = vadd.f32 %v602, 1.0
    %v618 = vadd.f32 %v604, 1.0
    %v619 = vadd.f32 %v606, 1.0
    %v620 = vadd.f32 %v608, 1.0
    %v621 = vadd.f32 %v610, 1.0
    %v622 = vadd.f32 %v612, 1.0
    %v623 = vadd.f32 %v614, 1.0
    %v624 = vadd.f32 %v616, 1.0
    %v625 = vrcp.pop %v617
    %v626 = vmul.f32 1.0, %v625
    %v627 = vrcp.pop %v618
    %v628 = vmul.f32 1.0, %v627
    %v629 = vrcp.pop %v619
    %v630 = vmul.f32 1.0, %v629
    %v631 = vrcp.pop %v620
    %v632 = vmul.f32 1.0, %v631
    %v633 = vrcp.pop %v621
    %v634 = vmul.f32 1.0, %v633
    %v635 = vrcp.pop %v622
    %v636 = vmul.f32 1.0, %v635
    %v637 = vrcp.pop %v623
    %v638 = vmul.f32 1.0, %v637
    %v639 = vrcp.pop %v624
    %v640 = vmul.f32 1.0, %v639
    %641 = vst [vmem:[#allocation4] sm:$0xff] %v626
    %642 = vst [vmem:[#allocation4 + $0x8] sm:$0xff] %v628
    %643 = vst [vmem:[#allocation4 + $0x10] sm:$0xff] %v630
    %644 = vst [vmem:[#allocation4 + $0x18] sm:$0xff] %v632
    %645 = vst [vmem:[#allocation4 + $0x20] sm:$0xff] %v634
    %646 = vst [vmem:[#allocation4 + $0x28] sm:$0xff] %v636
    %647 = vst [vmem:[#allocation4 + $0x30] sm:$0xff] %v638
    %648 = vst [vmem:[#allocation4 + $0x38] sm:$0xff] %v640
    %v649 = vld [vmem:[#allocation5] sm:$0xff]
    %v650 = vld [vmem:[#allocation2] sm:$0xff]
    %v651 = vld [vmem:[#allocation3] sm:$0xff]
    %v652 = vld [vmem:[#allocation4] sm:$0xff]
    %v653 = vsub.f32 %v650, %v649
    %v654 = vmul.f32 %v651, %v653
    %v655 = vadd.f32 %v649, %v654
    %v656 = vmul.f32 %v652, %v655
    %657 = vst [vmem:[#allocation20] sm:$0xff] %v656
    %s658 = scalar_lea.vmem [#allocation2], 8
    %v659 = vld [vmem:[%s658] sm:$0xff]
    %s660 = scalar_lea.vmem [#allocation3], 8
    %v661 = vld [vmem:[%s660] sm:$0xff]
    %s662 = scalar_lea.vmem [#allocation4], 8
    %v663 = vld [vmem:[%s662] sm:$0xff]
    %v664 = vsub.f32 %v659, %v655
    %v665 = vmul.f32 %v661, %v664
    %v666 = vadd.f32 %v655, %v665
    %v667 = vmul.f32 %v663, %v666
    %s668 = scalar_lea.vmem [#allocation20], 8
    %669 = vst [vmem:[%s668] sm:$0xff] %v667
    %s670 = scalar_lea.vmem [#allocation2], 16
    %v671 = vld [vmem:[%s670] sm:$0xff]
    %s672 = scalar_lea.vmem [#allocation3], 16
    %v673 = vld [vmem:[%s672] sm:$0xff]
    %s674 = scalar_lea.vmem [#allocation4], 16
    %v675 = vld [vmem:[%s674] sm:$0xff]
    %v676 = vsub.f32 %v671, %v666
    %v677 = vmul.f32 %v673, %v676
    %v678 = vadd.f32 %v666, %v677
    %v679 = vmul.f32 %v675, %v678
    %s680 = scalar_lea.vmem [#allocation20], 16
    %681 = vst [vmem:[%s680] sm:$0xff] %v679
    %s682 = scalar_lea.vmem [#allocation2], 24
    %v683 = vld [vmem:[%s682] sm:$0xff]
    %s684 = scalar_lea.vmem [#allocation3], 24
    %v685 = vld [vmem:[%s684] sm:$0xff]
    %s686 = scalar_lea.vmem [#allocation4], 24
    %v687 = vld [vmem:[%s686] sm:$0xff]
    %v688 = vsub.f32 %v683, %v678
    %v689 = vmul.f32 %v685, %v688
    %v690 = vadd.f32 %v678, %v689
    %v691 = vmul.f32 %v687, %v690
    %s692 = scalar_lea.vmem [#allocation20], 24
    %693 = vst [vmem:[%s692] sm:$0xff] %v691
    %s694 = scalar_lea.vmem [#allocation2], 32
    %v695 = vld [vmem:[%s694] sm:$0xff]
    %s696 = scalar_lea.vmem [#allocation3], 32
    %v697 = vld [vmem:[%s696] sm:$0xff]
    %s698 = scalar_lea.vmem [#allocation4], 32
    %v699 = vld [vmem:[%s698] sm:$0xff]
    %v700 = vsub.f32 %v695, %v690
    %v701 = vmul.f32 %v697, %v700
    %v702 = vadd.f32 %v690, %v701
    %v703 = vmul.f32 %v699, %v702
    %s704 = scalar_lea.vmem [#allocation20], 32
    %705 = vst [vmem:[%s704] sm:$0xff] %v703
    %s706 = scalar_lea.vmem [#allocation2], 40
    %v707 = vld [vmem:[%s706] sm:$0xff]
    %s708 = scalar_lea.vmem [#allocation3], 40
    %v709 = vld [vmem:[%s708] sm:$0xff]
    %s710 = scalar_lea.vmem [#allocation4], 40
    %v711 = vld [vmem:[%s710] sm:$0xff]
    %v712 = vsub.f32 %v707, %v702
    %v713 = vmul.f32 %v709, %v712
    %v714 = vadd.f32 %v702, %v713
    %v715 = vmul.f32 %v711, %v714
    %s716 = scalar_lea.vmem [#allocation20], 40
    %717 = vst [vmem:[%s716] sm:$0xff] %v715
    %s718 = scalar_lea.vmem [#allocation2], 48
    %v719 = vld [vmem:[%s718] sm:$0xff]
    %s720 = scalar_lea.vmem [#allocation3], 48
    %v721 = vld [vmem:[%s720] sm:$0xff]
    %s722 = scalar_lea.vmem [#allocation4], 48
    %v723 = vld [vmem:[%s722] sm:$0xff]
    %v724 = vsub.f32 %v719, %v714
    %v725 = vmul.f32 %v721, %v724
    %v726 = vadd.f32 %v714, %v725
    %v727 = vmul.f32 %v723, %v726
    %s728 = scalar_lea.vmem [#allocation20], 48
    %729 = vst [vmem:[%s728] sm:$0xff] %v727
    %s730 = scalar_lea.vmem [#allocation2], 56
    %v731 = vld [vmem:[%s730] sm:$0xff]
    %s732 = scalar_lea.vmem [#allocation3], 56
    %v733 = vld [vmem:[%s732] sm:$0xff]
    %s734 = scalar_lea.vmem [#allocation4], 56
    %v735 = vld [vmem:[%s734] sm:$0xff]
    %v736 = vsub.f32 %v731, %v726
    %v737 = vmul.f32 %v733, %v736
    %v738 = vadd.f32 %v726, %v737
    %v739 = vmul.f32 %v735, %v738
    %s740 = scalar_lea.vmem [#allocation20], 56
    %741 = vst [vmem:[%s740] sm:$0xff] %v739
    %742 = vst [vmem:[#allocation5] sm:$0xff] %v738
    // Predicated region
    $region70: #{tpu_custom_call.1} parent=1 // pred_check
      %p743 = pneg %p134
    $region71: #{tpu_custom_call.1} parent=1 // pred_check_branch
      %745 = sbr.rel (%p743) target = $region73
    $region72: #{tpu_custom_call.1} parent=1 // pred_region
      %746 = vst [vmem:[#allocation21] sm:$0xff] %v738
    $region73: #{tpu_custom_call.1} parent=1 // pred_fallthru
      _
    // Predicated region
    $region74: #{tpu_custom_call.1} parent=1 // pred_check
      _
    $region75: #{tpu_custom_call.1} parent=1 // pred_check_branch
      %748 = sbr.rel (0) target = $region77
    $region76: #{tpu_custom_call.1} parent=1 // pred_region
      %s750 = ssub.s32 1024, 1024
      %751 = vsyncadd [#allocation8], %s750
      %s752 = sshll.u32 [#allocation20], 4
      %s753 = int_to_ptr.vmem [resolvable:$true] %s752
      %758 = dma.vmem_to_hbm [thread:$0]  %s753, 1024, %s8, [#allocation8], 128, 128, 8
    $region77: #{tpu_custom_call.1} parent=1 // pred_fallthru
      _
    // Predicated region
    $region78: #{tpu_custom_call.1} parent=1 // pred_check
      _
    $region79: #{tpu_custom_call.1} parent=1 // pred_check_branch
      %760 = sbr.rel (0) target = $region81
    $region80: #{tpu_custom_call.1} parent=1 // pred_region
      %s762 = ssub.s32 128, 128
      %763 = vsyncadd [#allocation22], %s762
      %s765 = sshll.u32 [#allocation21], 4
      %s766 = int_to_ptr.vmem [resolvable:$true] %s765
      %768 = dma.vmem_to_hbm [thread:$0]  %s766, 128, %s9, [#allocation22]
    $region81: #{tpu_custom_call.1} parent=1 // pred_fallthru
      _
    // Predicated region
    $region82: #{tpu_custom_call.1} parent=1 // pred_check
      _
    $region83: #{tpu_custom_call.1} parent=1 // pred_check_branch
      %770 = sbr.rel (0) target = $region85
    $region84: #{tpu_custom_call.1} parent=1 // pred_region
      %771 = dma.done [#allocation8], 1024
    $region85: #{tpu_custom_call.1} parent=1 // pred_fallthru
      _
    // Predicated region
    $region86: #{tpu_custom_call.1} parent=1 // pred_check
      _
    $region87: #{tpu_custom_call.1} parent=1 // pred_check_branch
      %773 = sbr.rel (0) target = $region89
    $region88: #{tpu_custom_call.1} parent=1 // pred_region
      %774 = dma.done [#allocation22], 128
    $region89: #{tpu_custom_call.1} parent=1 // pred_fallthru
      _
    %775 = vsyncpa [#allocation7], 1
    %776 = vsyncpa [#allocation10], 1
    %777 = vsyncpa [#allocation13], 1
    %778 = vsyncpa [#allocation16], 1
    %779 = vsyncpa [#allocation19], 1
    %780 = vsyncpa [#allocation8], 1
    %781 = vsyncpa [#allocation22], 1

</llo_original>
